<compile_context>
chip_gen: v5e
topology: v5e:2x2
jax: 0.10.0
libtpu: 0.0.40
codegen_flags: <defaults>
</compile_context>

<pallas_src>
import jax
import jax.numpy as jnp
from jax.experimental import pallas as pl
from jax.experimental.pallas import tpu as pltpu


def _mlp_kernel(x_ref, w1_ref, b1_ref, w2_ref, b2_ref, w3_ref, b3_ref, o_ref):
    # x_ref: (10, TILE_B) bf16   w*: (out, in) bf16   b*: (out, 1) f32
    xT = x_ref[...]

    # layer1: Linear(10 -> 32) + ReLU   (f32 accumulate, f32 elementwise)
    h1 = jnp.dot(w1_ref[...], xT, preferred_element_type=jnp.float32) + b1_ref[...]
    h1 = jnp.maximum(h1, 0.0).astype(jnp.bfloat16)          # bf16 only for MXU

    # layer2: Linear(32 -> 32) + ReLU
    h2 = jnp.dot(w2_ref[...], h1, preferred_element_type=jnp.float32) + b2_ref[...]
    h2 = jnp.maximum(h2, 0.0).astype(jnp.bfloat16)

    # layer4: Linear(32 -> 10) + sigmoid
    out = jnp.dot(w3_ref[...], h2, preferred_element_type=jnp.float32) + b3_ref[...]
    o_ref[...] = jax.nn.sigmoid(out).astype(o_ref.dtype)    # (10, TILE_B) lane-dense store


def fully_connected_forward(x, params, *, tile_b=2048):
    """x: (B, 10) float32 (PyTorch layout).  Returns (B, 10) float32."""
    B, in_f = x.shape
    w1, b1 = params["w1"], params["b1"]        # (32, 10), (32, 1)
    w2, b2 = params["w2"], params["b2"]        # (32, 32), (32, 1)
    w3, b3 = params["w3"], params["b3"]        # (10, 32), (10, 1)
    out_f = w3.shape[0]

    lane = 128
    # Clamp the batch tile to the lane-rounded batch so tiny batches don't over-pad,
    # and force it to a multiple of 128 (lane-axis constraint).
    tile_b = max(lane, min(tile_b, lane * pl.cdiv(B, lane)))
    tile_b = lane * pl.cdiv(tile_b, lane)
    nb = pl.cdiv(B, tile_b)
    B_pad = nb * tile_b

    # Lane-dense layout + bf16 MXU operands (inputs are the dominant HBM bytes).
    xT = x.T.astype(jnp.bfloat16)                            # (10, B)
    if B_pad != B:
        xT = jnp.pad(xT, ((0, 0), (0, B_pad - B)))
    w1b, w2b, w3b = (w.astype(jnp.bfloat16) for w in (w1, w2, w3))

    full = lambda a: pl.BlockSpec(a.shape, lambda i: (0,) * a.ndim)  # grid-invariant

    cost = pl.CostEstimate(
        flops=2 * B_pad * (in_f * 32 + 32 * 32 + 32 * out_f),
        transcendentals=B_pad * out_f,                        # sigmoid
        bytes_accessed=(xT.size * 2 + B_pad * out_f * 4
                        + (w1b.size + w2b.size + w3b.size) * 2
                        + (b1.size + b2.size + b3.size) * 4),
    )

    outT = pl.pallas_call(
        _mlp_kernel,
        out_shape=jax.ShapeDtypeStruct((out_f, B_pad), jnp.float32),
        grid=(nb,),
        in_specs=[
            pl.BlockSpec((in_f, tile_b), lambda i: (0, i)),   # x tile (batch on lanes)
            full(w1b), full(b1), full(w2b), full(b2), full(w3b), full(b3),
        ],
        out_specs=pl.BlockSpec((out_f, tile_b), lambda i: (0, i)),
        compiler_params=pltpu.CompilerParams(
            dimension_semantics=("parallel",),                # shard batch tiles across TCs (v7x)
        ),
        cost_estimate=cost,
    )(xT, w1b, b1, w2b, b2, w3b, b3)

    return outT[:, :B].T                                      # back to PyTorch (B, 10)


def init_params(key):
    """Deterministic init mirroring PyTorch nn.Linear default U(-1/sqrt(fan_in), +).

    Weights are stored PyTorch-native (out, in); biases as (out, 1) columns so
    they broadcast across the lane (batch) axis inside the kernel.
    """
    dims = [(10, 32), (32, 32), (32, 10)]                     # (fan_in, fan_out)
    params = {}
    for i, (fan_in, fan_out) in enumerate(dims, start=1):
        key, kw, kb = jax.random.split(key, 3)
        bound = 1.0 / jnp.sqrt(fan_in)
        params[f"w{i}"] = jax.random.uniform(
            kw, (fan_out, fan_in), jnp.float32, -bound, bound)
        params[f"b{i}"] = jax.random.uniform(
            kb, (fan_out, 1), jnp.float32, -bound, bound)
    return params


def reference_forward(x, params):
    """Pure-JAX reference with the same bf16-MXU / f32-elementwise recipe."""
    xT = x.T.astype(jnp.bfloat16)
    w1 = params["w1"].astype(jnp.bfloat16)
    w2 = params["w2"].astype(jnp.bfloat16)
    w3 = params["w3"].astype(jnp.bfloat16)
    h1 = jnp.maximum(jnp.dot(w1, xT, preferred_element_type=jnp.float32)
                     + params["b1"], 0.0).astype(jnp.bfloat16)
    h2 = jnp.maximum(jnp.dot(w2, h1, preferred_element_type=jnp.float32)
                     + params["b2"], 0.0).astype(jnp.bfloat16)
    out = jnp.dot(w3, h2, preferred_element_type=jnp.float32) + params["b3"]
    return jax.nn.sigmoid(out).T


if __name__ == "__main__":
    key = jax.random.PRNGKey(0)
    k_x, k_p = jax.random.split(key)

    batch = 384                      # 3 batch tiles of 128 -> exercises the pipelined grid
    x = jax.random.normal(k_x, (batch, 10), jnp.float32)
    params = init_params(k_p)

    out = fully_connected_forward(x, params, tile_b=128)
    jax.block_until_ready(out)

    ref = reference_forward(x, params)
    assert out.shape == (batch, 10)
    assert jnp.allclose(out, ref, atol=1e-3, rtol=1e-3), float(jnp.max(jnp.abs(out - ref)))

    print("KERNEL_OK")
</pallas_src>

<mosaic_0001>
module attributes {stable_mosaic.version = 11 : i64} {
  func.func @_mlp_kernel(%arg0: i32, %arg1: memref<10x128xbf16, #tpu.memory_space<vmem>>, %arg2: memref<32x10xbf16, #tpu.memory_space<vmem>>, %arg3: memref<32x1xf32, #tpu.memory_space<vmem>>, %arg4: memref<32x32xbf16, #tpu.memory_space<vmem>>, %arg5: memref<32x1xf32, #tpu.memory_space<vmem>>, %arg6: memref<10x32xbf16, #tpu.memory_space<vmem>>, %arg7: memref<10x1xf32, #tpu.memory_space<vmem>>, %arg8: memref<10x128xf32, #tpu.memory_space<vmem>>) attributes {dimension_semantics = [#tpu.dimension_semantics<parallel>], iteration_bounds = array<i64: 3>, scalar_prefetch = 0 : i64, scratch_operands = 0 : i64, tpu.core_type = #tpu.core_type<tc>, window_params = [{transform_indices = @transform_0, window_bounds = array<i64: 10, 128>}, {pipeline_mode = #tpu.pipeline_mode<synchronous>, transform_indices = @transform_1, window_bounds = array<i64: 32, 10>}, {pipeline_mode = #tpu.pipeline_mode<synchronous>, transform_indices = @transform_2, window_bounds = array<i64: 32, 1>}, {pipeline_mode = #tpu.pipeline_mode<synchronous>, transform_indices = @transform_3, window_bounds = array<i64: 32, 32>}, {pipeline_mode = #tpu.pipeline_mode<synchronous>, transform_indices = @transform_4, window_bounds = array<i64: 32, 1>}, {pipeline_mode = #tpu.pipeline_mode<synchronous>, transform_indices = @transform_5, window_bounds = array<i64: 10, 32>}, {pipeline_mode = #tpu.pipeline_mode<synchronous>, transform_indices = @transform_6, window_bounds = array<i64: 10, 1>}, {transform_indices = @transform_7, window_bounds = array<i64: 10, 128>}]} {
    %c0 = arith.constant 0 : index
    %c0_0 = arith.constant 0 : index
    %0 = vector.load %arg1[%c0, %c0_0] : memref<10x128xbf16, #tpu.memory_space<vmem>>, vector<10x128xbf16>
    %c0_1 = arith.constant 0 : index
    %c0_2 = arith.constant 0 : index
    %1 = vector.load %arg2[%c0_1, %c0_2] : memref<32x10xbf16, #tpu.memory_space<vmem>>, vector<32x10xbf16>
    %cst = arith.constant dense<0.000000e+00> : vector<32x128xf32>
    %2 = tpu.matmul %1, %0, %cst {dimension_numbers = #tpu.dot_dimension_numbers<[1], [0], [0], [1], [0, 0, 1, 1], [], []>} : vector<32x10xbf16>, vector<10x128xbf16>, vector<32x128xf32> -> vector<32x128xf32>
    %c0_3 = arith.constant 0 : index
    %c0_4 = arith.constant 0 : index
    %3 = vector.load %arg3[%c0_3, %c0_4] : memref<32x1xf32, #tpu.memory_space<vmem>>, vector<32x1xf32>
    %4 = vector.broadcast %3 : vector<32x1xf32> to vector<32x128xf32>
    %5 = arith.addf %2, %4 : vector<32x128xf32>
    %cst_5 = arith.constant 0.000000e+00 : f32
    %6 = vector.broadcast %cst_5 : f32 to vector<32x128xf32>
    %7 = arith.maximumf %5, %6 : vector<32x128xf32>
    %8 = arith.truncf %7 : vector<32x128xf32> to vector<32x128xbf16>
    %c0_6 = arith.constant 0 : index
    %c0_7 = arith.constant 0 : index
    %9 = vector.load %arg4[%c0_6, %c0_7] : memref<32x32xbf16, #tpu.memory_space<vmem>>, vector<32x32xbf16>
    %cst_8 = arith.constant dense<0.000000e+00> : vector<32x128xf32>
    %10 = tpu.matmul %9, %8, %cst_8 {dimension_numbers = #tpu.dot_dimension_numbers<[1], [0], [0], [1], [0, 0, 1, 1], [], []>} : vector<32x32xbf16>, vector<32x128xbf16>, vector<32x128xf32> -> vector<32x128xf32>
    %c0_9 = arith.constant 0 : index
    %c0_10 = arith.constant 0 : index
    %11 = vector.load %arg5[%c0_9, %c0_10] : memref<32x1xf32, #tpu.memory_space<vmem>>, vector<32x1xf32>
    %12 = vector.broadcast %11 : vector<32x1xf32> to vector<32x128xf32>
    %13 = arith.addf %10, %12 : vector<32x128xf32>
    %cst_11 = arith.constant 0.000000e+00 : f32
    %14 = vector.broadcast %cst_11 : f32 to vector<32x128xf32>
    %15 = arith.maximumf %13, %14 : vector<32x128xf32>
    %16 = arith.truncf %15 : vector<32x128xf32> to vector<32x128xbf16>
    %c0_12 = arith.constant 0 : index
    %c0_13 = arith.constant 0 : index
    %17 = vector.load %arg6[%c0_12, %c0_13] : memref<10x32xbf16, #tpu.memory_space<vmem>>, vector<10x32xbf16>
    %cst_14 = arith.constant dense<0.000000e+00> : vector<10x128xf32>
    %18 = tpu.matmul %17, %16, %cst_14 {dimension_numbers = #tpu.dot_dimension_numbers<[1], [0], [0], [1], [0, 0, 1, 1], [], []>} : vector<10x32xbf16>, vector<32x128xbf16>, vector<10x128xf32> -> vector<10x128xf32>
    %c0_15 = arith.constant 0 : index
    %c0_16 = arith.constant 0 : index
    %19 = vector.load %arg7[%c0_15, %c0_16] : memref<10x1xf32, #tpu.memory_space<vmem>>, vector<10x1xf32>
    %20 = vector.broadcast %19 : vector<10x1xf32> to vector<10x128xf32>
    %21 = arith.addf %18, %20 : vector<10x128xf32>
    %22 = arith.negf %21 : vector<10x128xf32>
    %23 = math.exp %22 : vector<10x128xf32>
    %cst_17 = arith.constant 1.000000e+00 : f32
    %24 = vector.broadcast %cst_17 : f32 to vector<10x128xf32>
    %25 = arith.addf %24, %23 : vector<10x128xf32>
    %26 = arith.divf %24, %25 : vector<10x128xf32>
    %c0_18 = arith.constant 0 : index
    %c0_19 = arith.constant 0 : index
    %27 = vector.load %arg8[%c0_18, %c0_19] : memref<10x128xf32, #tpu.memory_space<vmem>>, vector<10x128xf32>
    tpu.vector_store %arg8[%c0_18, %c0_19], %26 {strides = array<i32>} : memref<10x128xf32, #tpu.memory_space<vmem>>, vector<10x128xf32>,
    return
  }
  func.func @transform_0(%arg0: i32) -> (i32, i32) {
    %c0_i32 = arith.constant 0 : i32
    %c0_i32_0 = arith.constant 0 : i32
    return %c0_i32, %arg0 : i32, i32
  }
  func.func @transform_1(%arg0: i32) -> (i32, i32) {
    %c0_i32 = arith.constant 0 : i32
    %c0_i32_0 = arith.constant 0 : i32
    %c0_i32_1 = arith.constant 0 : i32
    return %c0_i32, %c0_i32_0 : i32, i32
  }
  func.func @transform_2(%arg0: i32) -> (i32, i32) {
    %c0_i32 = arith.constant 0 : i32
    %c0_i32_0 = arith.constant 0 : i32
    %c0_i32_1 = arith.constant 0 : i32
    return %c0_i32, %c0_i32_0 : i32, i32
  }
  func.func @transform_3(%arg0: i32) -> (i32, i32) {
    %c0_i32 = arith.constant 0 : i32
    %c0_i32_0 = arith.constant 0 : i32
    %c0_i32_1 = arith.constant 0 : i32
    return %c0_i32, %c0_i32_0 : i32, i32
  }
  func.func @transform_4(%arg0: i32) -> (i32, i32) {
    %c0_i32 = arith.constant 0 : i32
    %c0_i32_0 = arith.constant 0 : i32
    %c0_i32_1 = arith.constant 0 : i32
    return %c0_i32, %c0_i32_0 : i32, i32
  }
  func.func @transform_5(%arg0: i32) -> (i32, i32) {
    %c0_i32 = arith.constant 0 : i32
    %c0_i32_0 = arith.constant 0 : i32
    %c0_i32_1 = arith.constant 0 : i32
    return %c0_i32, %c0_i32_0 : i32, i32
  }
  func.func @transform_6(%arg0: i32) -> (i32, i32) {
    %c0_i32 = arith.constant 0 : i32
    %c0_i32_0 = arith.constant 0 : i32
    %c0_i32_1 = arith.constant 0 : i32
    return %c0_i32, %c0_i32_0 : i32, i32
  }
  func.func @transform_7(%arg0: i32) -> (i32, i32) {
    %c0_i32 = arith.constant 0 : i32
    %c0_i32_0 = arith.constant 0 : i32
    return %c0_i32, %arg0 : i32, i32
  }
}

</mosaic_0001>

<llo_original>
// kernel: tpu_custom_call.1
$region0: #{tpu_custom_call.1}
  #allocation0 [shape = 'u32[]', space=smem, size = 0x4, offset = 0x4, fixed_abs, tag = 'smem constant byte address 0x4 - core index']
  #allocation1 [shape = 'u32[72,128]{1,0:T(1,128)}', space=vmem, size = 0x9000, scoped, tag = 'internal scratch']
  %s0 = inlined_call_operand.vmem [shape: bf16[10,384], index: 0, kind: input, shape index: {}]
  %s1 = inlined_call_operand.vmem [shape: bf16[32,10], index: 1, kind: input, shape index: {}]
  %s2 = inlined_call_operand.vmem [shape: f32[32,1], index: 2, kind: input, shape index: {}]
  %s3 = inlined_call_operand.vmem [shape: bf16[32,32], index: 3, kind: input, shape index: {}]
  %s4 = inlined_call_operand.vmem [shape: f32[32,1], index: 4, kind: input, shape index: {}]
  %s5 = inlined_call_operand.vmem [shape: bf16[10,32], index: 5, kind: input, shape index: {}]
  %s6 = inlined_call_operand.vmem [shape: f32[10,1], index: 6, kind: input, shape index: {}]
  %s7 = inlined_call_operand.hbm [shape: f32[10,384], index: 7, kind: output, shape index: {}]
  %s8 = sld [smem:[#allocation0]]
  $region102: #{tpu_custom_call.1} parent=0
    _
  %s10 = ssub.s32 1, %s8
  %s11 = scalar_select 0, %s10, %s8
  $region1: #{tpu_custom_call.1} parent=0
    #allocation2 [shape = 'u8[8192]{0}', space=vmem, size = 0x2000, scoped, tag = 'input window, operand 0']
    #allocation3 [shape = 'u8[16384]{0}', space=vmem, size = 0x4000, scoped, tag = 'output window, operand 0']
    #allocation4 [shape = 's32[2]{0}', space=sflag, size = 0x8, scoped, tag = 'scoped memory for tpu_custom_call.1']
    %12 = vsyncpa [#allocation4], 0
    %s13 = scalar_lea.sflag [#allocation4], 1
    %14 = vsyncpa %s13, 0
    loop: start=0, step=1, limit=5
    $region2: #{tpu_custom_call.1} parent=1 // loop_pre_header
      _
    $region3: #{tpu_custom_call.1} parent=1 // loop_header
      %s16 = sphi 0, %s20
      %p17 = scmp.ge.s32.totalorder %s16, 5
      %s26 = sphi 0, %s28
      %s29 = sphi 0, %s26
      %s30 = sphi 0, %s29
      %s46 = sphi 0, %s30
      %s50 = sphi 0, %s50
      %s52 = sphi 0, %s50
      %s53 = sphi 0, %s52
      %s67 = sphi 0, %s53
      %s71 = sphi 0, %s71
      %s73 = sphi 0, %s71
      %s74 = sphi 0, %s73
      %s88 = sphi 0, %s74
      %s92 = sphi 0, %s92
      %s94 = sphi 0, %s92
      %s95 = sphi 0, %s94
      %s109 = sphi 0, %s95
      %s113 = sphi 0, %s113
      %s115 = sphi 0, %s113
      %s116 = sphi 0, %s115
      %s130 = sphi 0, %s116
      %s134 = sphi 0, %s134
      %s136 = sphi 0, %s134
      %s137 = sphi 0, %s136
      %s151 = sphi 0, %s137
      %s155 = sphi 0, %s155
      %s157 = sphi 0, %s155
      %s158 = sphi 0, %s157
      %s172 = sphi 0, %s158
      %s178 = sphi 0, %s180
      %s181 = sphi 0, %s178
      %s182 = sphi 0, %s181
      %s198 = sphi 0, %s182
    $region4: #{tpu_custom_call.1} parent=1 // loop_header_branch
      %19 = sbr.rel (%p17) target = $region8
    $region5: #{tpu_custom_call.1} parent=1 // loop_body
      %s21 = ssub.s32 %s16, 1
      %s22 = ssub.s32 %s16, 2
      %s23 = sadd.s32 %s16, 1
      %s24 = ssub.s32 %s16, %s23
      %p25 = scmp.eq.s32.totalorder %s24, 0
      %s27 = sadd.s32 %s26, 1
      %s28 = scalar_select %p25, %s26, %s27
      %p31 = pneg %p25
      %p32 = scmp.eq.s32.totalorder %s16, 2
      %p33 = por %p31, %p32
      %p34 = scmp.ne.s32.totalorder %s26, %s29
      %p35 = scmp.eq.s32.totalorder %s16, 0
      %p36 = por %p34, %p35
      %p37 = scmp.ne.s32.totalorder %s26, %s29
      %p38 = scmp.eq.s32.totalorder %s21, 2
      %p39 = por %p37, %p38
      %p40 = scmp.ne.s32.totalorder %s29, %s30
      %p41 = scmp.eq.s32.totalorder %s21, 0
      %p42 = por %p40, %p41
      %p43 = scmp.ne.s32.totalorder %s29, %s30
      %p44 = scmp.eq.s32.totalorder %s22, 2
      %p45 = por %p43, %p44
      %p47 = scmp.ne.s32.totalorder %s30, %s46
      %p48 = scmp.eq.s32.totalorder %s22, 0
      %p49 = por %p47, %p48
      %s51 = sadd.s32 %s50, 1
      %p54 = scmp.eq.s32.totalorder %s16, 2
      %p55 = scmp.ne.s32.totalorder %s50, %s52
      %p56 = scmp.eq.s32.totalorder %s16, 0
      %p57 = por %p55, %p56
      %p58 = scmp.ne.s32.totalorder %s50, %s52
      %p59 = scmp.eq.s32.totalorder %s21, 2
      %p60 = por %p58, %p59
      %p61 = scmp.ne.s32.totalorder %s52, %s53
      %p62 = scmp.eq.s32.totalorder %s21, 0
      %p63 = por %p61, %p62
      %p64 = scmp.ne.s32.totalorder %s52, %s53
      %p65 = scmp.eq.s32.totalorder %s22, 2
      %p66 = por %p64, %p65
      %p68 = scmp.ne.s32.totalorder %s53, %s67
      %p69 = scmp.eq.s32.totalorder %s22, 0
      %p70 = por %p68, %p69
      %s72 = sadd.s32 %s71, 1
      %p75 = scmp.eq.s32.totalorder %s16, 2
      %p76 = scmp.ne.s32.totalorder %s71, %s73
      %p77 = scmp.eq.s32.totalorder %s16, 0
      %p78 = por %p76, %p77
      %p79 = scmp.ne.s32.totalorder %s71, %s73
      %p80 = scmp.eq.s32.totalorder %s21, 2
      %p81 = por %p79, %p80
      %p82 = scmp.ne.s32.totalorder %s73, %s74
      %p83 = scmp.eq.s32.totalorder %s21, 0
      %p84 = por %p82, %p83
      %p85 = scmp.ne.s32.totalorder %s73, %s74
      %p86 = scmp.eq.s32.totalorder %s22, 2
      %p87 = por %p85, %p86
      %p89 = scmp.ne.s32.totalorder %s74, %s88
      %p90 = scmp.eq.s32.totalorder %s22, 0
      %p91 = por %p89, %p90
      %s93 = sadd.s32 %s92, 1
      %p96 = scmp.eq.s32.totalorder %s16, 2
      %p97 = scmp.ne.s32.totalorder %s92, %s94
      %p98 = scmp.eq.s32.totalorder %s16, 0
      %p99 = por %p97, %p98
      %p100 = scmp.ne.s32.totalorder %s92, %s94
      %p101 = scmp.eq.s32.totalorder %s21, 2
      %p102 = por %p100, %p101
      %p103 = scmp.ne.s32.totalorder %s94, %s95
      %p104 = scmp.eq.s32.totalorder %s21, 0
      %p105 = por %p103, %p104
      %p106 = scmp.ne.s32.totalorder %s94, %s95
      %p107 = scmp.eq.s32.totalorder %s22, 2
      %p108 = por %p106, %p107
      %p110 = scmp.ne.s32.totalorder %s95, %s109
      %p111 = scmp.eq.s32.totalorder %s22, 0
      %p112 = por %p110, %p111
      %s114 = sadd.s32 %s113, 1
      %p117 = scmp.eq.s32.totalorder %s16, 2
      %p118 = scmp.ne.s32.totalorder %s113, %s115
      %p119 = scmp.eq.s32.totalorder %s16, 0
      %p120 = por %p118, %p119
      %p121 = scmp.ne.s32.totalorder %s113, %s115
      %p122 = scmp.eq.s32.totalorder %s21, 2
      %p123 = por %p121, %p122
      %p124 = scmp.ne.s32.totalorder %s115, %s116
      %p125 = scmp.eq.s32.totalorder %s21, 0
      %p126 = por %p124, %p125
      %p127 = scmp.ne.s32.totalorder %s115, %s116
      %p128 = scmp.eq.s32.totalorder %s22, 2
      %p129 = por %p127, %p128
      %p131 = scmp.ne.s32.totalorder %s116, %s130
      %p132 = scmp.eq.s32.totalorder %s22, 0
      %p133 = por %p131, %p132
      %s135 = sadd.s32 %s134, 1
      %p138 = scmp.eq.s32.totalorder %s16, 2
      %p139 = scmp.ne.s32.totalorder %s134, %s136
      %p140 = scmp.eq.s32.totalorder %s16, 0
      %p141 = por %p139, %p140
      %p142 = scmp.ne.s32.totalorder %s134, %s136
      %p143 = scmp.eq.s32.totalorder %s21, 2
      %p144 = por %p142, %p143
      %p145 = scmp.ne.s32.totalorder %s136, %s137
      %p146 = scmp.eq.s32.totalorder %s21, 0
      %p147 = por %p145, %p146
      %p148 = scmp.ne.s32.totalorder %s136, %s137
      %p149 = scmp.eq.s32.totalorder %s22, 2
      %p150 = por %p148, %p149
      %p152 = scmp.ne.s32.totalorder %s137, %s151
      %p153 = scmp.eq.s32.totalorder %s22, 0
      %p154 = por %p152, %p153
      %s156 = sadd.s32 %s155, 1
      %p159 = scmp.eq.s32.totalorder %s16, 2
      %p160 = scmp.ne.s32.totalorder %s155, %s157
      %p161 = scmp.eq.s32.totalorder %s16, 0
      %p162 = por %p160, %p161
      %p163 = scmp.ne.s32.totalorder %s155, %s157
      %p164 = scmp.eq.s32.totalorder %s21, 2
      %p165 = por %p163, %p164
      %p166 = scmp.ne.s32.totalorder %s157, %s158
      %p167 = scmp.eq.s32.totalorder %s21, 0
      %p168 = por %p166, %p167
      %p169 = scmp.ne.s32.totalorder %s157, %s158
      %p170 = scmp.eq.s32.totalorder %s22, 2
      %p171 = por %p169, %p170
      %p173 = scmp.ne.s32.totalorder %s158, %s172
      %p174 = scmp.eq.s32.totalorder %s22, 0
      %p175 = por %p173, %p174
      %s176 = ssub.s32 %s16, %s23
      %p177 = scmp.eq.s32.totalorder %s176, 0
      %s179 = sadd.s32 %s178, 1
      %s180 = scalar_select %p177, %s178, %s179
      %p183 = pneg %p177
      %p184 = scmp.eq.s32.totalorder %s16, 2
      %p185 = por %p183, %p184
      %p186 = scmp.ne.s32.totalorder %s178, %s181
      %p187 = scmp.eq.s32.totalorder %s16, 0
      %p188 = por %p186, %p187
      %p189 = scmp.ne.s32.totalorder %s178, %s181
      %p190 = scmp.eq.s32.totalorder %s21, 2
      %p191 = por %p189, %p190
      %p192 = scmp.ne.s32.totalorder %s181, %s182
      %p193 = scmp.eq.s32.totalorder %s21, 0
      %p194 = por %p192, %p193
      %p195 = scmp.ne.s32.totalorder %s181, %s182
      %p196 = scmp.eq.s32.totalorder %s22, 2
      %p197 = por %p195, %p196
      %p199 = scmp.ne.s32.totalorder %s182, %s198
      %p200 = scmp.eq.s32.totalorder %s22, 0
      %p201 = por %p199, %p200
      %p202 = scmp.le.s32.totalorder 1, %s16
      %p203 = scmp.lt.s32.totalorder %s16, 4
      %p204 = pnand %p202, %p203
      %p205 = pneg %p204
      // Predicated region
      $region9: #{tpu_custom_call.1} parent=5 // pred_check
        _
      $region10: #{tpu_custom_call.1} parent=5 // pred_check_branch
        %207 = sbr.rel (%p204) target = $region12
      $region11: #{tpu_custom_call.1} parent=5 // pred_region
        %s208 = ssub.s32 %s16, 1
        // Predicated region
        $region13: #{tpu_custom_call.1} parent=11 // pred_check
          %p209 = pneg %p63
        $region14: #{tpu_custom_call.1} parent=11 // pred_check_branch
          %211 = sbr.rel (%p209) target = $region16
        $region15: #{tpu_custom_call.1} parent=11 // pred_region
          _
        $region16: #{tpu_custom_call.1} parent=11 // pred_fallthru
          _
        // Predicated region
        $region17: #{tpu_custom_call.1} parent=11 // pred_check
          %p212 = pneg %p84
        $region18: #{tpu_custom_call.1} parent=11 // pred_check_branch
          %214 = sbr.rel (%p212) target = $region20
        $region19: #{tpu_custom_call.1} parent=11 // pred_region
          _
        $region20: #{tpu_custom_call.1} parent=11 // pred_fallthru
          _
        // Predicated region
        $region21: #{tpu_custom_call.1} parent=11 // pred_check
          %p215 = pneg %p105
        $region22: #{tpu_custom_call.1} parent=11 // pred_check_branch
          %217 = sbr.rel (%p215) target = $region24
        $region23: #{tpu_custom_call.1} parent=11 // pred_region
          _
        $region24: #{tpu_custom_call.1} parent=11 // pred_fallthru
          _
        // Predicated region
        $region25: #{tpu_custom_call.1} parent=11 // pred_check
          %p218 = pneg %p126
        $region26: #{tpu_custom_call.1} parent=11 // pred_check_branch
          %220 = sbr.rel (%p218) target = $region28
        $region27: #{tpu_custom_call.1} parent=11 // pred_region
          _
        $region28: #{tpu_custom_call.1} parent=11 // pred_fallthru
          _
        // Predicated region
        $region29: #{tpu_custom_call.1} parent=11 // pred_check
          %p221 = pneg %p147
        $region30: #{tpu_custom_call.1} parent=11 // pred_check_branch
          %223 = sbr.rel (%p221) target = $region32
        $region31: #{tpu_custom_call.1} parent=11 // pred_region
          _
        $region32: #{tpu_custom_call.1} parent=11 // pred_fallthru
          _
        // Predicated region
        $region33: #{tpu_custom_call.1} parent=11 // pred_check
          %p224 = pneg %p168
        $region34: #{tpu_custom_call.1} parent=11 // pred_check_branch
          %226 = sbr.rel (%p224) target = $region36
        $region35: #{tpu_custom_call.1} parent=11 // pred_region
          _
        $region36: #{tpu_custom_call.1} parent=11 // pred_fallthru
          _
      $region12: #{tpu_custom_call.1} parent=5 // pred_fallthru
        _
      %p227 = scmp.lt.s32.totalorder %s16, 3
      // Predicated region
      $region37: #{tpu_custom_call.1} parent=5 // pred_check
        %p228 = pneg %p227
      $region38: #{tpu_custom_call.1} parent=5 // pred_check_branch
        %230 = sbr.rel (%p228) target = $region40
      $region39: #{tpu_custom_call.1} parent=5 // pred_region
        // Predicated region
        $region41: #{tpu_custom_call.1} parent=39 // pred_check
          %p231 = pneg %p36
        $region42: #{tpu_custom_call.1} parent=39 // pred_check_branch
          %233 = sbr.rel (%p231) target = $region44
        $region43: #{tpu_custom_call.1} parent=39 // pred_region
          %s234 = sand.u32 %s26, 1
          %s235 = sand.u32 %s26, 1
          %s236 = smul.addr %s235, 8
          %s237 = scalar_lea.vmem [#allocation2], %s236
          %s238 = smul.addr %s16, 4
          %s239 = scalar_lea.vmem %s0, %s238
          // Predicated region
          $region45: #{tpu_custom_call.1} parent=43 // pred_check
            _
          $region46: #{tpu_custom_call.1} parent=43 // pred_check_branch
            %241 = sbr.rel (0) target = $region48
          $region47: #{tpu_custom_call.1} parent=43 // pred_region
            // Predicated region
            $region49: #{tpu_custom_call.1} parent=47 // pred_check
              _
            $region50: #{tpu_custom_call.1} parent=47 // pred_check_branch
              %243 = sbr.rel target = $region52
            $region51: #{tpu_custom_call.1} parent=47 // pred_region
              // Predicated region
              $region64: #{tpu_custom_call.1} parent=51 // pred_check
                _
              $region65: #{tpu_custom_call.1} parent=51 // pred_check_branch
                %261 = sbr.rel (0) target = $region67
              $region66: #{tpu_custom_call.1} parent=51 // pred_region
                loop: start=0, step=1, limit=1
                $region68: #{tpu_custom_call.1} parent=66 // loop_pre_header
                  _
                $region69: #{tpu_custom_call.1} parent=66 // loop_header
                  %s263 = sphi 0, %s267
                  %p264 = scmp.ge.s32.totalorder %s263, 1
                  %s268 = sphi %s239, %s239
                  %s269 = sphi %s237, %s237
                $region70: #{tpu_custom_call.1} parent=66 // loop_header_branch
                  %266 = sbr.rel (%p264) target = $region74
                $region71: #{tpu_custom_call.1} parent=66 // loop_body
                  _
                $region72: #{tpu_custom_call.1} parent=66 // loop_footer
                  %s267 = sadd.s32 1, %s263
                $region73: #{tpu_custom_call.1} parent=66 // loop_footer_branch
                  %262 = sbr.rel target = $region69
                $region74: #{tpu_custom_call.1} parent=66 // loop_exit
                  _
                %s271 = ssub.s32 16, 1
                loop: start=0, step=1, limit=1
                $region75: #{tpu_custom_call.1} parent=66 // loop_pre_header
                  _
                $region76: #{tpu_custom_call.1} parent=66 // loop_header
                  %s273 = sphi 0, %s277
                  %p274 = scmp.ge.s32.totalorder %s273, 1
                  %s278 = sphi %s239, %s239
                  %s279 = sphi %s237, %s237
                $region77: #{tpu_custom_call.1} parent=66 // loop_header_branch
                  %276 = sbr.rel (%p274) target = $region81
                $region78: #{tpu_custom_call.1} parent=66 // loop_body
                  %v280 = vld [vmem:[%s278] sm:%s271]
                  %281 = vst [vmem:[%s279] sm:%s271] %v280
                  %v282 = vld [vmem:[%s278 + $0xc] sm:%s271]
                  %283 = vst [vmem:[%s279 + $0x4] sm:%s271] %v282
                $region79: #{tpu_custom_call.1} parent=66 // loop_footer
                  %s277 = sadd.s32 1, %s273
                $region80: #{tpu_custom_call.1} parent=66 // loop_footer_branch
                  %272 = sbr.rel target = $region76
                $region81: #{tpu_custom_call.1} parent=66 // loop_exit
                  _
              $region67: #{tpu_custom_call.1} parent=51 // pred_fallthru
                _
            $region52: #{tpu_custom_call.1} parent=47 // pred_fallthru
              _
            // Predicated region
            $region53: #{tpu_custom_call.1} parent=47 // pred_check
              _
            $region54: #{tpu_custom_call.1} parent=47 // pred_check_branch
              %245 = sbr.rel (0) target = $region56
            $region55: #{tpu_custom_call.1} parent=47 // pred_region
              %s247 = ssub.s32 16, 1
              loop: start=0, step=1, limit=1
              $region57: #{tpu_custom_call.1} parent=55 // loop_pre_header
                _
              $region58: #{tpu_custom_call.1} parent=55 // loop_header
                %s249 = sphi 0, %s253
                %p250 = scmp.ge.s32.totalorder %s249, 1
                %s254 = sphi %s239, %s239
                %s255 = sphi %s237, %s237
              $region59: #{tpu_custom_call.1} parent=55 // loop_header_branch
                %252 = sbr.rel (%p250) target = $region63
              $region60: #{tpu_custom_call.1} parent=55 // loop_body
                %v256 = vld [vmem:[%s254] sm:%s247]
                %257 = vst [vmem:[%s255] sm:%s247] %v256
                %v258 = vld [vmem:[%s254 + $0xc] sm:%s247]
                %259 = vst [vmem:[%s255 + $0x4] sm:%s247] %v258
              $region61: #{tpu_custom_call.1} parent=55 // loop_footer
                %s253 = sadd.s32 1, %s249
              $region62: #{tpu_custom_call.1} parent=55 // loop_footer_branch
                %248 = sbr.rel target = $region58
              $region63: #{tpu_custom_call.1} parent=55 // loop_exit
                _
            $region56: #{tpu_custom_call.1} parent=47 // pred_fallthru
              _
          $region48: #{tpu_custom_call.1} parent=43 // pred_fallthru
            _
          %284 = vnop
        $region44: #{tpu_custom_call.1} parent=39 // pred_fallthru
          _
      $region40: #{tpu_custom_call.1} parent=5 // pred_fallthru
        _
      %p285 = scmp.le.s32.totalorder 1, %s16
      %p286 = scmp.lt.s32.totalorder %s16, 4
      %p287 = pnand %p285, %p286
      %p288 = pneg %p287
      // Predicated region
      $region82: #{tpu_custom_call.1} parent=5 // pred_check
        _
      $region83: #{tpu_custom_call.1} parent=5 // pred_check_branch
        %290 = sbr.rel (%p287) target = $region85
      $region84: #{tpu_custom_call.1} parent=5 // pred_region
        %s291 = ssub.s32 %s16, 1
        %s292 = sand.u32 %s29, 1
        %s293 = sand.u32 %s29, 1
        %s294 = smul.addr %s293, 8
        %s295 = scalar_lea.vmem [#allocation2], %s294
        // Predicated region
        $region86: #{tpu_custom_call.1} parent=84 // pred_check
          %p296 = pneg %p42
        $region87: #{tpu_custom_call.1} parent=84 // pred_check_branch
          %298 = sbr.rel (%p296) target = $region89
        $region88: #{tpu_custom_call.1} parent=84 // pred_region
          _
        $region89: #{tpu_custom_call.1} parent=84 // pred_fallthru
          _
        %s299 = sand.u32 %s29, 1
        %s300 = sand.u32 %s29, 1
        %s301 = smul.addr %s300, 8
        %s302 = scalar_lea.vmem [#allocation2], %s301
        %p303 = pneg %p42
        %p304 = pneg %p39
        %p305 = pneg %p63
        %p306 = pneg %p60
        %p307 = pneg %p84
        %p308 = pneg %p81
        %p309 = pneg %p105
        %p310 = pneg %p102
        %p311 = pneg %p126
        %p312 = pneg %p123
        %p313 = pneg %p147
        %p314 = pneg %p144
        %p315 = pneg %p168
        %p316 = pneg %p165
        %p317 = pneg %p194
        %p318 = pneg %p191
        %s319 = sand.u32 %s181, 1
        %s320 = scalar_lea.sflag [#allocation4], %s319
        %s321 = sand.u32 %s181, 1
        %s322 = smul.addr %s321, 16
        %s323 = scalar_lea.vmem [#allocation3], %s322
        %v325 = vld [vmem:[%s295] sm:$0xf]
        %v326 = vld [vmem:[%s295 + $0x4] sm:$0x1]
        %v327 = vld [vmem:[%s1] sm:$0xf]
        %v328 = vld [vmem:[%s1 + $0x4] sm:$0xf]
        %v329 = vld [vmem:[%s1 + $0x8] sm:$0xf]
        %v330 = vld [vmem:[%s1 + $0xc] sm:$0xf]
        %v331 = vld [vmem:[%s2] sm:$0xff]
        %v332 = vld [vmem:[%s2 + $0x8] sm:$0xff]
        %v333 = vld [vmem:[%s2 + $0x10] sm:$0xff]
        %v334 = vld [vmem:[%s2 + $0x18] sm:$0xff]
        %336 = vset.pattern.permute.xlu0 0
        %337 = vperm.xlu0 %336, %v331
        %v338 = vpop.permute.xlu0 %337
        %341 = vset.pattern.permute.xlu0 0
        %342 = vperm.xlu0 %341, %v332
        %v343 = vpop.permute.xlu0 %342
        %346 = vset.pattern.permute.xlu0 0
        %347 = vperm.xlu0 %346, %v333
        %v348 = vpop.permute.xlu0 %347
        %351 = vset.pattern.permute.xlu0 0
        %352 = vperm.xlu0 %351, %v334
        %v353 = vpop.permute.xlu0 %352
        %v359 = vunpack.c.l.b16 %v327
        %v360 = vunpack.c.l.b16 %v328
        %v361 = vunpack.c.l.b16 %v329
        %v362 = vunpack.c.l.b16 %v330
        %v363 = vpack.c.b16 %v360, %v359
        %v364 = vpack.c.b16 %v362, %v361
        %v367 = vunpack.c.l.b16 %v325
        %v368 = vunpack.c.l.b16 %v326
        %v369 = vpack.c.b16 %v368, %v367
        %vm370 = vcmask 80896
        %v372 = vsel %vm370, %v363, 0
        %v375 = vsel %vm370, %v364, 0
        %vm377 = vcmask 1044480
        %v379 = vsel %vm377, %v369, 0
        %381 = vmatpush.bf16.msra.mxu0 0
        %382 = vmatpush.bf16.msra.mxu0 0
        %383 = vmatpush.bf16.msra.mxu0 0
        %384 = vmatpush.bf16.msra.mxu0 0
        %385 = vmatpush.bf16.msra.mxu0 0
        %386 = vmatpush.bf16.msra.mxu0 0
        %387 = vmatpush.bf16.msra.mxu0 0
        %388 = vmatpush.bf16.msra.mxu0 %v379
        %389 = vmatmul.bf16.gmra.mxu0 %v372
        %v390 = vpop.f32.mrf.mxu0
        %v391 = vadd.f32 %v338, %v390
        %v392 = vpop.f32.mrf.mxu0
        %v393 = vadd.f32 %v343, %v392
        %394 = vmatmul.bf16.gmra.mxu0 %v375
        %v395 = vpop.f32.mrf.mxu0
        %v396 = vadd.f32 %v348, %v395
        %v397 = vpop.f32.mrf.mxu0
        %v398 = vadd.f32 %v353, %v397
        %399 = vdwg.mxu0
        %v400 = vmax.f32 %v391, 0.0
        %v401 = vmax.f32 %v393, 0.0
        %v402 = vmax.f32 %v396, 0.0
        %v403 = vmax.f32 %v398, 0.0
        %v404 = vpack.c.bf16 %v401, %v400
        %v405 = vpack.c.bf16 %v403, %v402
        %v406 = vld [vmem:[%s3] sm:$0xf]
        %v407 = vld [vmem:[%s3 + $0x4] sm:$0xf]
        %v408 = vld [vmem:[%s3 + $0x8] sm:$0xf]
        %v409 = vld [vmem:[%s3 + $0xc] sm:$0xf]
        %v410 = vld [vmem:[%s4] sm:$0xff]
        %v411 = vld [vmem:[%s4 + $0x8] sm:$0xff]
        %v412 = vld [vmem:[%s4 + $0x10] sm:$0xff]
        %v413 = vld [vmem:[%s4 + $0x18] sm:$0xff]
        %415 = vset.pattern.permute.xlu0 0
        %416 = vperm.xlu0 %415, %v410
        %v417 = vpop.permute.xlu0 %416
        %420 = vset.pattern.permute.xlu0 0
        %421 = vperm.xlu0 %420, %v411
        %v422 = vpop.permute.xlu0 %421
        %425 = vset.pattern.permute.xlu0 0
        %426 = vperm.xlu0 %425, %v412
        %v427 = vpop.permute.xlu0 %426
        %430 = vset.pattern.permute.xlu0 0
        %431 = vperm.xlu0 %430, %v413
        %v432 = vpop.permute.xlu0 %431
        %v438 = vunpack.c.l.b16 %v406
        %v439 = vunpack.c.l.b16 %v407
        %v440 = vunpack.c.l.b16 %v408
        %v441 = vunpack.c.l.b16 %v409
        %v442 = vpack.c.b16 %v439, %v438
        %v443 = vpack.c.b16 %v441, %v440
        %vm444 = vcmask 261120
        %v446 = vsel %vm444, %v442, 0
        %v449 = vsel %vm444, %v443, 0
        %451 = vmatpush.bf16.msra.mxu0 0
        %452 = vmatpush.bf16.msra.mxu0 0
        %453 = vmatpush.bf16.msra.mxu0 0
        %454 = vmatpush.bf16.msra.mxu0 0
        %455 = vmatpush.bf16.msra.mxu0 0
        %456 = vmatpush.bf16.msra.mxu0 0
        %457 = vmatpush.bf16.msra.mxu0 %v405
        %458 = vmatpush.bf16.msra.mxu0 %v404
        %459 = vmatmul.bf16.gmra.mxu0 %v446
        %v460 = vpop.f32.mrf.mxu0
        %v461 = vadd.f32 %v417, %v460
        %v462 = vpop.f32.mrf.mxu0
        %v463 = vadd.f32 %v422, %v462
        %464 = vmatmul.bf16.gmra.mxu0 %v449
        %v465 = vpop.f32.mrf.mxu0
        %v466 = vadd.f32 %v427, %v465
        %v467 = vpop.f32.mrf.mxu0
        %v468 = vadd.f32 %v432, %v467
        %469 = vdwg.mxu0
        %v470 = vmax.f32 %v461, 0.0
        %v471 = vmax.f32 %v463, 0.0
        %v472 = vmax.f32 %v466, 0.0
        %v473 = vmax.f32 %v468, 0.0
        %v474 = vpack.c.bf16 %v471, %v470
        %v475 = vpack.c.bf16 %v473, %v472
        %v476 = vld [vmem:[%s5] sm:$0xf]
        %v477 = vld [vmem:[%s5 + $0x4] sm:$0x1]
        %v478 = vld [vmem:[%s6] sm:$0xff]
        %v479 = vld [vmem:[%s6 + $0x8] sm:$0x3]
        %481 = vset.pattern.permute.xlu0 0
        %482 = vperm.xlu0 %481, %v478
        %v483 = vpop.permute.xlu0 %482
        %486 = vset.pattern.permute.xlu0 0
        %487 = vperm.xlu0 %486, %v479
        %v488 = vpop.permute.xlu0 %487
        %v492 = vunpack.c.l.b16 %v476
        %v493 = vunpack.c.l.b16 %v477
        %v494 = vpack.c.b16 %v493, %v492
        %v496 = vsel %vm444, %v494, 0
        %498 = vmatpush.bf16.msra.mxu0 0
        %499 = vmatpush.bf16.msra.mxu0 0
        %500 = vmatpush.bf16.msra.mxu0 0
        %501 = vmatpush.bf16.msra.mxu0 0
        %502 = vmatpush.bf16.msra.mxu0 0
        %503 = vmatpush.bf16.msra.mxu0 0
        %504 = vmatpush.bf16.msra.mxu0 %v475
        %505 = vmatpush.bf16.msra.mxu0 %v474
        %506 = vmatmul.bf16.gmra.mxu0 %v496
        %v507 = vpop.f32.mrf.mxu0
        %v508 = vadd.f32 %v483, %v507
        %v509 = vpop.f32.mrf.mxu0
        %v510 = vadd.f32 %v488, %v509
        %511 = vdwg.mxu0
        %v512 = vxor.u32 %v508, 2147483648
        %v513 = vxor.u32 %v510, 2147483648
        %v514 = vmul.f32 %v512, 1.442695
        %v515 = vpow.pop %v514
        %v516 = vmul.f32 %v513, 1.442695
        %v517 = vpow.pop %v516
        %v518 = vadd.f32 %v515, 1.0
        %v519 = vadd.f32 %v517, 1.0
        %v520 = vrcp.pop %v518
        %v521 = vmul.f32 %v518, %v520
        %v522 = vsub.f32 1.0, %v521
        %v523 = vmul.f32 %v520, %v522
        %v524 = vadd.f32 %v520, %v523
        %vm525 = vweird.f32 %v518
        %vm526 = vweird.f32 %v520
        %vm527 = vmor %vm525, %vm526
        %v528 = vsel %vm527, %v520, %v524
        %v529 = vand.u32 2147483647, %v518
        %vm530 = vcmp.eq.f32.partialorder %v529, 8.507059e+37
        %v531 = vand.u32 %v518, 2147483648
        %v532 = vor.u32 1.1754944e-38, %v531
        %v533 = vsel %vm530, %v532, %v528
        %v534 = vmul.f32 1.0, %v533
        %v535 = vrcp.pop %v519
        %v536 = vmul.f32 %v519, %v535
        %v537 = vsub.f32 1.0, %v536
        %v538 = vmul.f32 %v535, %v537
        %v539 = vadd.f32 %v535, %v538
        %vm540 = vweird.f32 %v519
        %vm541 = vweird.f32 %v535
        %vm542 = vmor %vm540, %vm541
        %v543 = vsel %vm542, %v535, %v539
        %v544 = vand.u32 2147483647, %v519
        %vm545 = vcmp.eq.f32.partialorder %v544, 8.507059e+37
        %v546 = vand.u32 %v519, 2147483648
        %v547 = vor.u32 1.1754944e-38, %v546
        %v548 = vsel %vm545, %v547, %v543
        %v549 = vmul.f32 1.0, %v548
        %550 = vst [vmem:[%s323] sm:$0xff] %v534
        %551 = vst [vmem:[%s323 + $0x8] sm:$0x3] %v549
        %s552 = sand.u32 %s181, 1
        %s553 = scalar_lea.sflag [#allocation4], %s552
        %s554 = sand.u32 %s181, 1
        %s555 = smul.addr %s554, 16
        %s556 = scalar_lea.vmem [#allocation3], %s555
        // Predicated region
        $region90: #{tpu_custom_call.1} parent=84 // pred_check
          %p557 = pneg %p191
        $region91: #{tpu_custom_call.1} parent=84 // pred_check_branch
          %559 = sbr.rel (%p557) target = $region93
        $region92: #{tpu_custom_call.1} parent=84 // pred_region
          %561 = vsyncadd %s553, 0
          %s562 = smul.addr %s21, 8
          %s563 = scalar_lea.hbm %s7, %s562
          %s564 = sshll.u32 %s556, 4
          %s565 = int_to_ptr.vmem [resolvable:$true] %s564
          %s566 = sshll.u32 %s563, 4
          %s567 = int_to_ptr.hbm [resolvable:$true] %s566
          %572 = dma.vmem_to_hbm [thread:$0]  %s565, 256, %s567, %s553, 128, 384, 8
        $region93: #{tpu_custom_call.1} parent=84 // pred_fallthru
          _
      $region85: #{tpu_custom_call.1} parent=5 // pred_fallthru
        _
      %p573 = scmp.le.s32.totalorder 2, %s16
      // Predicated region
      $region94: #{tpu_custom_call.1} parent=5 // pred_check
        %p574 = pneg %p573
      $region95: #{tpu_custom_call.1} parent=5 // pred_check_branch
        %576 = sbr.rel (%p574) target = $region97
      $region96: #{tpu_custom_call.1} parent=5 // pred_region
        %s577 = ssub.s32 %s16, 2
        // Predicated region
        $region98: #{tpu_custom_call.1} parent=96 // pred_check
          %p578 = pneg %p197
        $region99: #{tpu_custom_call.1} parent=96 // pred_check_branch
          %580 = sbr.rel (%p578) target = $region101
        $region100: #{tpu_custom_call.1} parent=96 // pred_region
          %s581 = sand.u32 %s182, 1
          %s582 = scalar_lea.sflag [#allocation4], %s581
          %s583 = sand.u32 %s182, 1
          %s584 = smul.addr %s583, 16
          %s585 = scalar_lea.vmem [#allocation3], %s584
          %587 = dma.done %s582, 256
        $region101: #{tpu_custom_call.1} parent=96 // pred_fallthru
          _
      $region97: #{tpu_custom_call.1} parent=5 // pred_fallthru
        _
    $region6: #{tpu_custom_call.1} parent=1 // loop_footer
      %s20 = sadd.s32 1, %s16
    $region7: #{tpu_custom_call.1} parent=1 // loop_footer_branch
      %15 = sbr.rel target = $region3
    $region8: #{tpu_custom_call.1} parent=1 // loop_exit
      _
    %588 = vsyncpa [#allocation4], 1
    %s589 = scalar_lea.sflag [#allocation4], 1
    %590 = vsyncpa %s589, 1

</llo_original>
